<compile_context>
chip_gen: v7x
topology: tpu7x:2x2x1
jax: 0.10.0
libtpu: 0.0.40
codegen_flags: <defaults>
</compile_context>

<pallas_src>
import math

import jax
import jax.numpy as jnp
from jax.experimental import pallas as pl
from jax.experimental.pallas import tpu as pltpu

IMG_SIZE = 32          # small test image (module default is 256)
PATCH = 8
IN_CHANS = 3
EMBED_DIM = 512


def _round_up(x, m):
    return (x + m - 1) // m * m


def _choose_tm(M):
    """Row tile for the (M, K) @ (K, N) projection.

    - small / odd M: one exact-fit tile (single grid step, no padded rows)
    - large M: biggest tile that still leaves >= 2 grid steps (v7x has two
      TensorCores under "parallel") and wastes <= ~12.5% padded rows.
    """
    M16 = _round_up(max(M, 16), 16)        # bf16 sublane granularity
    if M16 <= 512:
        return M16
    for tm in (2048, 1024, 512, 256, 128):
        if M16 < 2 * tm:
            continue
        Mp = _round_up(M16, tm)
        if (Mp - M16) * 8 <= Mp:           # <= 12.5% padded-row waste
            return tm
    return 128


# ---------------------------------------------------------------------------
# Pallas kernel: (tm, K) @ (K, N) + bias   (single K pass, f32 accumulate)
# ---------------------------------------------------------------------------
def _patch_proj_kernel(x_ref, w_ref, b_ref, o_ref):
    # bf16 operands feed the MXU at peak; accumulate in f32, bias epilogue in
    # f32 (keeps v5e's no-bf16 VPU happy), narrow only at the final store.
    acc = jnp.dot(x_ref[...], w_ref[...], preferred_element_type=jnp.float32)
    o_ref[...] = (acc + b_ref[...]).astype(o_ref.dtype)


def patch_proj_matmul(patches_bf16, wm_bf16, bias):
    """patches (M, K) bf16 @ wm (K, N) bf16 + bias (N,) f32 -> (M, N) bf16.

    wm_bf16 is the pre-transposed / pre-cast conv weight, built once at
    parameter-construction time.
    """
    M, K = patches_bf16.shape
    Kw, N = wm_bf16.shape
    assert Kw == K and N % 128 == 0

    tm = _choose_tm(M)
    Mp = _round_up(M, tm)

    x = patches_bf16
    if Mp != M:
        x = jnp.pad(x, ((0, Mp - M), (0, 0)))      # zero rows, sliced off below

    bias2d = bias.reshape(1, N).astype(jnp.float32)

    cost = pl.CostEstimate(
        flops=2 * Mp * K * N,
        transcendentals=0,
        bytes_accessed=Mp * K * 2 + K * N * 2 + N * 4 + Mp * N * 2,
    )

    out = pl.pallas_call(
        _patch_proj_kernel,
        out_shape=jax.ShapeDtypeStruct((Mp, N), jnp.bfloat16),   # bf16 output stream
        grid_spec=pltpu.PrefetchScalarGridSpec(
            num_scalar_prefetch=0,
            grid=(Mp // tm,),
            in_specs=[
                pl.BlockSpec((tm, K), lambda i: (i, 0)),   # activations: tiled
                pl.BlockSpec((K, N), lambda i: (0, 0)),    # weight: VMEM-resident
                pl.BlockSpec((1, N), lambda i: (0, 0)),    # bias: VMEM-resident
            ],
            out_specs=pl.BlockSpec((tm, N), lambda i: (i, 0)),   # lane-dense stores
        ),
        compiler_params=pltpu.CompilerParams(
            dimension_semantics=("parallel",),               # megacore / v7x 2-TC
            allow_input_fusion=[True, False, False],         # fuse cast into x load
        ),
        cost_estimate=cost,
    )(x, wm_bf16, bias2d)
    return out[:M]


# ---------------------------------------------------------------------------
# PatchEmbed parameters & forward
# ---------------------------------------------------------------------------
def build_patch_embed_params(key, in_chans=IN_CHANS, embed_dim=EMBED_DIM,
                             patch=PATCH):
    """Conv2d(in_chans, embed_dim, kernel_size=patch, stride=patch) params.

    The (Cout, Cin, kh, kw) conv weight is reshaped / transposed / cast to
    bf16 ONCE here, so the per-call path does no weight work.
    """
    kw_, kb_ = jax.random.split(key)
    fan_in = in_chans * patch * patch                      # K = 192
    bound = 1.0 / math.sqrt(fan_in)                        # PyTorch default init
    w = jax.random.uniform(kw_, (embed_dim, in_chans, patch, patch),
                           jnp.float32, -bound, bound)
    b = jax.random.uniform(kb_, (embed_dim,), jnp.float32, -bound, bound)

    wm = jnp.transpose(w.reshape(embed_dim, fan_in), (1, 0))   # (K, N), no K pad
    return {
        "w": w,                               # original conv layout (reference)
        "b": b,
        "wm_bf16": wm.astype(jnp.bfloat16),   # pre-packed MXU operand
    }


def _extract_patches_bf16(x, patch):
    """[B,C,H,W] f32 -> (B*Hp*Wp, C*patch*patch) bf16, (C, kh, kw) flat order."""
    B, C, H, W = x.shape
    Hp, Wp = H // patch, W // patch
    xb = x.astype(jnp.bfloat16)               # cast BEFORE the permute: half bytes
    p = xb.reshape(B, C, Hp, patch, Wp, patch)
    p = jnp.transpose(p, (0, 2, 4, 1, 3, 5))
    return p.reshape(B * Hp * Wp, C * patch * patch), (B, Hp, Wp)


def patch_embed_tokens(params, x, patch=PATCH):
    """(B, Hp*Wp, embed_dim) bf16 tokens — skips the NHWC->NCHW transpose for
    consumers (the StyTR transformer) that flatten immediately afterwards."""
    patches, (B, Hp, Wp) = _extract_patches_bf16(x, patch)
    y = patch_proj_matmul(patches, params["wm_bf16"], params["b"])
    return y.reshape(B, Hp * Wp, -1)


def patch_embed_forward(params, x, patch=PATCH, out_dtype=jnp.float32):
    """PatchEmbed.forward: strided conv projection.  x: [B,C,H,W] f32.

    Returns [B, embed_dim, H/patch, W/patch] (NCHW, like nn.Conv2d)."""
    patches, (B, Hp, Wp) = _extract_patches_bf16(x, patch)
    y = patch_proj_matmul(patches, params["wm_bf16"], params["b"])  # (M, N) bf16
    y = y.reshape(B, Hp, Wp, -1)
    # NHWC -> NCHW on the bf16 tokens (half the transpose read traffic); the
    # upcast to the module's f32 output dtype fuses into the same copy.
    return jnp.transpose(y, (0, 3, 1, 2)).astype(out_dtype)


if __name__ == "__main__":
    key = jax.random.PRNGKey(0)
    kp, kx = jax.random.split(key)
    params = build_patch_embed_params(kp)

    # batch=2, 3x32x32 images  ->  patch grid 4x4, output [2, 512, 4, 4]
    x = jax.random.uniform(kx, (2, IN_CHANS, IMG_SIZE, IMG_SIZE), jnp.float32)

    y = jax.jit(patch_embed_forward)(params, x)
    y = jax.block_until_ready(y)
    assert y.shape == (2, EMBED_DIM, IMG_SIZE // PATCH, IMG_SIZE // PATCH)
    assert y.dtype == jnp.float32

    # Reference: f32 einsum over the same patches (bf16 MXU operands + bf16
    # output store => loose tolerance).
    B, C, H, W = x.shape
    Hp, Wp = H // PATCH, W // PATCH
    pref = x.reshape(B, C, Hp, PATCH, Wp, PATCH)
    pref = jnp.transpose(pref, (0, 2, 4, 1, 3, 5)).reshape(
        B, Hp, Wp, C * PATCH * PATCH)
    wm_ref = jnp.transpose(params["w"].reshape(EMBED_DIM, -1), (1, 0))
    ref = jnp.einsum("bhwk,kn->bhwn", pref, wm_ref,
                     preferred_element_type=jnp.float32) + params["b"]
    ref = jnp.transpose(ref, (0, 3, 1, 2))

    err = float(jnp.max(jnp.abs(y - ref)))
    assert bool(jnp.all(jnp.isfinite(y))), "non-finite output"
    assert err < 5e-2, f"max abs error too large: {err}"

    # Token path (transpose-free consumer API) must match the NCHW output.
    t = jax.block_until_ready(jax.jit(patch_embed_tokens)(params, x))
    assert t.shape == (B, Hp * Wp, EMBED_DIM)
    t_nchw = jnp.transpose(t.reshape(B, Hp, Wp, -1), (0, 3, 1, 2)).astype(jnp.float32)
    assert float(jnp.max(jnp.abs(t_nchw - y))) == 0.0

    print("KERNEL_OK")
</pallas_src>

<mosaic_0001>
module attributes {stable_mosaic.version = 11 : i64} {
  func.func @_patch_proj_kernel(%arg0: i32, %arg1: memref<32x192xbf16, #tpu.memory_space<vmem>>, %arg2: memref<192x512xbf16, #tpu.memory_space<vmem>>, %arg3: memref<1x512xf32, #tpu.memory_space<vmem>>, %arg4: memref<32x512xbf16, #tpu.memory_space<vmem>>) attributes {dimension_semantics = [#tpu.dimension_semantics<parallel>], iteration_bounds = array<i64: 1>, scalar_prefetch = 0 : i64, scratch_operands = 0 : i64, tpu.core_type = #tpu.core_type<tc>, window_params = [{transform_indices = @transform_0, window_bounds = array<i64: 32, 192>}, {pipeline_mode = #tpu.pipeline_mode<synchronous>, transform_indices = @transform_1, window_bounds = array<i64: 192, 512>}, {pipeline_mode = #tpu.pipeline_mode<synchronous>, transform_indices = @transform_2, window_bounds = array<i64: 1, 512>}, {transform_indices = @transform_3, window_bounds = array<i64: 32, 512>}]} {
    %c0 = arith.constant 0 : index
    %c0_0 = arith.constant 0 : index
    %0 = vector.load %arg1[%c0, %c0_0] : memref<32x192xbf16, #tpu.memory_space<vmem>>, vector<32x192xbf16>
    %c0_1 = arith.constant 0 : index
    %c0_2 = arith.constant 0 : index
    %1 = vector.load %arg2[%c0_1, %c0_2] : memref<192x512xbf16, #tpu.memory_space<vmem>>, vector<192x512xbf16>
    %cst = arith.constant dense<0.000000e+00> : vector<32x512xf32>
    %2 = tpu.matmul %0, %1, %cst {dimension_numbers = #tpu.dot_dimension_numbers<[1], [0], [0], [1], [0, 0, 1, 1], [], []>} : vector<32x192xbf16>, vector<192x512xbf16>, vector<32x512xf32> -> vector<32x512xf32>
    %c0_3 = arith.constant 0 : index
    %c0_4 = arith.constant 0 : index
    %3 = vector.load %arg3[%c0_3, %c0_4] : memref<1x512xf32, #tpu.memory_space<vmem>>, vector<1x512xf32>
    %4 = vector.broadcast %3 : vector<1x512xf32> to vector<32x512xf32>
    %5 = arith.addf %2, %4 : vector<32x512xf32>
    %6 = arith.truncf %5 : vector<32x512xf32> to vector<32x512xbf16>
    %c0_5 = arith.constant 0 : index
    %c0_6 = arith.constant 0 : index
    %7 = vector.load %arg4[%c0_5, %c0_6] : memref<32x512xbf16, #tpu.memory_space<vmem>>, vector<32x512xbf16>
    tpu.vector_store %arg4[%c0_5, %c0_6], %6 {strides = array<i32>} : memref<32x512xbf16, #tpu.memory_space<vmem>>, vector<32x512xbf16>,
    return
  }
  func.func @transform_0(%arg0: i32) -> (i32, i32) {
    %c0_i32 = arith.constant 0 : i32
    %c0_i32_0 = arith.constant 0 : i32
    return %arg0, %c0_i32 : i32, i32
  }
  func.func @transform_1(%arg0: i32) -> (i32, i32) {
    %c0_i32 = arith.constant 0 : i32
    %c0_i32_0 = arith.constant 0 : i32
    %c0_i32_1 = arith.constant 0 : i32
    return %c0_i32, %c0_i32_0 : i32, i32
  }
  func.func @transform_2(%arg0: i32) -> (i32, i32) {
    %c0_i32 = arith.constant 0 : i32
    %c0_i32_0 = arith.constant 0 : i32
    %c0_i32_1 = arith.constant 0 : i32
    return %c0_i32, %c0_i32_0 : i32, i32
  }
  func.func @transform_3(%arg0: i32) -> (i32, i32) {
    %c0_i32 = arith.constant 0 : i32
    %c0_i32_0 = arith.constant 0 : i32
    return %arg0, %c0_i32 : i32, i32
  }
}

</mosaic_0001>

<llo_original>
// kernel: patch_embed_forward.1
$region0: #{patch_embed_forward.1}
  #allocation0 [shape = 'u32[]', space=smem, size = 0x4, offset = 0x4, fixed_abs, tag = 'smem constant byte address 0x4 - core index']
  #allocation1 [shape = 'u32[144,128]{1,0:T(1,128)}', space=vmem, size = 0x12000, scoped, tag = 'internal scratch']
  %s0 = inlined_call_operand.vmem [shape: bf16[32,192], index: 0, kind: input, shape index: {}]
  %s1 = inlined_call_operand.vmem [shape: bf16[192,512], index: 1, kind: input, shape index: {}]
  %s2 = inlined_call_operand.vmem [shape: f32[1,512], index: 2, kind: input, shape index: {}]
  %s3 = inlined_call_operand.vmem [shape: bf16[32,512], index: 3, kind: output, shape index: {}]
  %s4 = sld [smem:[#allocation0]]
  $region22: #{patch_embed_forward.1} parent=0
    _
  %s6 = ssub.s32 1, %s4
  %s7 = scalar_select 0, %s6, %s4
  // Predicated region
  $region2: #{patch_embed_forward.1} parent=0 // pred_check
    _
  $region3: #{patch_embed_forward.1} parent=0 // pred_check_branch
    %9 = sbr.rel (0) target = $region5
  $region4: #{patch_embed_forward.1} parent=0 // pred_region
    _
  $region5: #{patch_embed_forward.1} parent=0 // pred_fallthru
    _
  // Predicated region
  $region6: #{patch_embed_forward.1} parent=0 // pred_check
    _
  $region7: #{patch_embed_forward.1} parent=0 // pred_check_branch
    %11 = sbr.rel (0) target = $region9
  $region8: #{patch_embed_forward.1} parent=0 // pred_region
    _
  $region9: #{patch_embed_forward.1} parent=0 // pred_fallthru
    _
  // Predicated region
  $region10: #{patch_embed_forward.1} parent=0 // pred_check
    _
  $region11: #{patch_embed_forward.1} parent=0 // pred_check_branch
    %13 = sbr.rel (0) target = $region13
  $region12: #{patch_embed_forward.1} parent=0 // pred_region
    _
  $region13: #{patch_embed_forward.1} parent=0 // pred_fallthru
    _
  %v15 = vld [vmem:[%s0] sm:$0xff]
  %v16 = vld [vmem:[%s0 + $0x8] sm:$0xff]
  %v17 = vld [vmem:[%s0 + $0x10] sm:$0xff]
  %v18 = vld [vmem:[%s0 + $0x18] sm:$0xff]
  %v19 = vld [vmem:[%s1] sm:$0xff]
  %v20 = vld [vmem:[%s1 + $0x8] sm:$0xff]
  %v21 = vld [vmem:[%s1 + $0x10] sm:$0xff]
  %v22 = vld [vmem:[%s1 + $0x18] sm:$0xff]
  %v23 = vld [vmem:[%s1 + $0x20] sm:$0xff]
  %v24 = vld [vmem:[%s1 + $0x28] sm:$0xff]
  %v25 = vld [vmem:[%s1 + $0x30] sm:$0xff]
  %v26 = vld [vmem:[%s1 + $0x38] sm:$0xff]
  %v27 = vld [vmem:[%s1 + $0x40] sm:$0xff]
  %v28 = vld [vmem:[%s1 + $0x48] sm:$0xff]
  %v29 = vld [vmem:[%s1 + $0x50] sm:$0xff]
  %v30 = vld [vmem:[%s1 + $0x58] sm:$0xff]
  %v31 = vld [vmem:[%s1 + $0x60] sm:$0xff]
  %v32 = vld [vmem:[%s1 + $0x68] sm:$0xff]
  %v33 = vld [vmem:[%s1 + $0x70] sm:$0xff]
  %v34 = vld [vmem:[%s1 + $0x78] sm:$0xff]
  %v35 = vld [vmem:[%s1 + $0x80] sm:$0xff]
  %v36 = vld [vmem:[%s1 + $0x88] sm:$0xff]
  %v37 = vld [vmem:[%s1 + $0x90] sm:$0xff]
  %v38 = vld [vmem:[%s1 + $0x98] sm:$0xff]
  %v39 = vld [vmem:[%s1 + $0xa0] sm:$0xff]
  %v40 = vld [vmem:[%s1 + $0xa8] sm:$0xff]
  %v41 = vld [vmem:[%s1 + $0xb0] sm:$0xff]
  %v42 = vld [vmem:[%s1 + $0xb8] sm:$0xff]
  %v43 = vld [vmem:[%s1 + $0xc0] sm:$0xff]
  %v44 = vld [vmem:[%s1 + $0xc8] sm:$0xff]
  %v45 = vld [vmem:[%s1 + $0xd0] sm:$0xff]
  %v46 = vld [vmem:[%s1 + $0xd8] sm:$0xff]
  %v47 = vld [vmem:[%s1 + $0xe0] sm:$0xff]
  %v48 = vld [vmem:[%s1 + $0xe8] sm:$0xff]
  %v49 = vld [vmem:[%s1 + $0xf0] sm:$0xff]
  %v50 = vld [vmem:[%s1 + $0xf8] sm:$0xff]
  %v51 = vld [vmem:[%s1 + $0x100] sm:$0xff]
  %v52 = vld [vmem:[%s1 + $0x108] sm:$0xff]
  %v53 = vld [vmem:[%s1 + $0x110] sm:$0xff]
  %v54 = vld [vmem:[%s1 + $0x118] sm:$0xff]
  %v55 = vld [vmem:[%s1 + $0x120] sm:$0xff]
  %v56 = vld [vmem:[%s1 + $0x128] sm:$0xff]
  %v57 = vld [vmem:[%s1 + $0x130] sm:$0xff]
  %v58 = vld [vmem:[%s1 + $0x138] sm:$0xff]
  %v59 = vld [vmem:[%s1 + $0x140] sm:$0xff]
  %v60 = vld [vmem:[%s1 + $0x148] sm:$0xff]
  %v61 = vld [vmem:[%s1 + $0x150] sm:$0xff]
  %v62 = vld [vmem:[%s1 + $0x158] sm:$0xff]
  %v63 = vld [vmem:[%s1 + $0x160] sm:$0xff]
  %v64 = vld [vmem:[%s1 + $0x168] sm:$0xff]
  %v65 = vld [vmem:[%s1 + $0x170] sm:$0xff]
  %v66 = vld [vmem:[%s1 + $0x178] sm:$0xff]
  %v67 = vld [vmem:[%s2] sm:$0xf]
  %v69 = vlaneseq
  %v70 = vshrl.u32 %v69, 7
  %v71 = vsub.s32 0, %v70
  %v72 = vrot.slane %v67, %v71
  %v73 = vlaneseq
  %v74 = vshrl.u32 %v73, 7
  %v75 = vsub.s32 1, %v74
  %v76 = vrot.slane %v67, %v75
  %v77 = vlaneseq
  %v78 = vshrl.u32 %v77, 7
  %v79 = vsub.s32 2, %v78
  %v80 = vrot.slane %v67, %v79
  %v81 = vlaneseq
  %v82 = vshrl.u32 %v81, 7
  %v83 = vsub.s32 3, %v82
  %v84 = vrot.slane %v67, %v83
  %v93 = vunpack.c.l.b16 %v15
  %v94 = vunpack.c.h.b16 %v15
  %v95 = vunpack.c.l.b16 %v16
  %v96 = vunpack.c.h.b16 %v16
  %v97 = vunpack.c.l.b16 %v17
  %v98 = vunpack.c.h.b16 %v17
  %v99 = vunpack.c.l.b16 %v18
  %v100 = vunpack.c.h.b16 %v18
  %v101 = vpack.c.b16 %v95, %v93
  %v102 = vpack.c.b16 %v96, %v94
  %v103 = vpack.c.b16 %v99, %v97
  %v104 = vpack.c.b16 %v100, %v98
  %v155 = vunpack.c.l.b16 %v19
  %v156 = vunpack.c.h.b16 %v19
  %v157 = vunpack.c.l.b16 %v20
  %v158 = vunpack.c.h.b16 %v20
  %v159 = vunpack.c.l.b16 %v21
  %v160 = vunpack.c.h.b16 %v21
  %v161 = vunpack.c.l.b16 %v22
  %v162 = vunpack.c.h.b16 %v22
  %v163 = vunpack.c.l.b16 %v23
  %v164 = vunpack.c.h.b16 %v23
  %v165 = vunpack.c.l.b16 %v24
  %v166 = vunpack.c.h.b16 %v24
  %v167 = vunpack.c.l.b16 %v25
  %v168 = vunpack.c.h.b16 %v25
  %v169 = vunpack.c.l.b16 %v26
  %v170 = vunpack.c.h.b16 %v26
  %v171 = vunpack.c.l.b16 %v27
  %v172 = vunpack.c.h.b16 %v27
  %v173 = vunpack.c.l.b16 %v28
  %v174 = vunpack.c.h.b16 %v28
  %v175 = vunpack.c.l.b16 %v29
  %v176 = vunpack.c.h.b16 %v29
  %v177 = vunpack.c.l.b16 %v30
  %v178 = vunpack.c.h.b16 %v30
  %v179 = vunpack.c.l.b16 %v31
  %v180 = vunpack.c.h.b16 %v31
  %v181 = vunpack.c.l.b16 %v32
  %v182 = vunpack.c.h.b16 %v32
  %v183 = vunpack.c.l.b16 %v33
  %v184 = vunpack.c.h.b16 %v33
  %v185 = vunpack.c.l.b16 %v34
  %v186 = vunpack.c.h.b16 %v34
  %v187 = vunpack.c.l.b16 %v35
  %v188 = vunpack.c.h.b16 %v35
  %v189 = vunpack.c.l.b16 %v36
  %v190 = vunpack.c.h.b16 %v36
  %v191 = vunpack.c.l.b16 %v37
  %v192 = vunpack.c.h.b16 %v37
  %v193 = vunpack.c.l.b16 %v38
  %v194 = vunpack.c.h.b16 %v38
  %v195 = vunpack.c.l.b16 %v39
  %v196 = vunpack.c.h.b16 %v39
  %v197 = vunpack.c.l.b16 %v40
  %v198 = vunpack.c.h.b16 %v40
  %v199 = vunpack.c.l.b16 %v41
  %v200 = vunpack.c.h.b16 %v41
  %v201 = vunpack.c.l.b16 %v42
  %v202 = vunpack.c.h.b16 %v42
  %v203 = vunpack.c.l.b16 %v43
  %v204 = vunpack.c.h.b16 %v43
  %v205 = vunpack.c.l.b16 %v44
  %v206 = vunpack.c.h.b16 %v44
  %v207 = vunpack.c.l.b16 %v45
  %v208 = vunpack.c.h.b16 %v45
  %v209 = vunpack.c.l.b16 %v46
  %v210 = vunpack.c.h.b16 %v46
  %v211 = vunpack.c.l.b16 %v47
  %v212 = vunpack.c.h.b16 %v47
  %v213 = vunpack.c.l.b16 %v48
  %v214 = vunpack.c.h.b16 %v48
  %v215 = vunpack.c.l.b16 %v49
  %v216 = vunpack.c.h.b16 %v49
  %v217 = vunpack.c.l.b16 %v50
  %v218 = vunpack.c.h.b16 %v50
  %v219 = vunpack.c.l.b16 %v51
  %v220 = vunpack.c.h.b16 %v51
  %v221 = vunpack.c.l.b16 %v52
  %v222 = vunpack.c.h.b16 %v52
  %v223 = vunpack.c.l.b16 %v53
  %v224 = vunpack.c.h.b16 %v53
  %v225 = vunpack.c.l.b16 %v54
  %v226 = vunpack.c.h.b16 %v54
  %v227 = vunpack.c.l.b16 %v55
  %v228 = vunpack.c.h.b16 %v55
  %v229 = vunpack.c.l.b16 %v56
  %v230 = vunpack.c.h.b16 %v56
  %v231 = vunpack.c.l.b16 %v57
  %v232 = vunpack.c.h.b16 %v57
  %v233 = vunpack.c.l.b16 %v58
  %v234 = vunpack.c.h.b16 %v58
  %v235 = vunpack.c.l.b16 %v59
  %v236 = vunpack.c.h.b16 %v59
  %v237 = vunpack.c.l.b16 %v60
  %v238 = vunpack.c.h.b16 %v60
  %v239 = vunpack.c.l.b16 %v61
  %v240 = vunpack.c.h.b16 %v61
  %v241 = vunpack.c.l.b16 %v62
  %v242 = vunpack.c.h.b16 %v62
  %v243 = vunpack.c.l.b16 %v63
  %v244 = vunpack.c.h.b16 %v63
  %v245 = vunpack.c.l.b16 %v64
  %v246 = vunpack.c.h.b16 %v64
  %v247 = vunpack.c.l.b16 %v65
  %v248 = vunpack.c.h.b16 %v65
  %v249 = vunpack.c.l.b16 %v66
  %v250 = vunpack.c.h.b16 %v66
  %v251 = vpack.c.b16 %v159, %v155
  %v252 = vpack.c.b16 %v160, %v156
  %v253 = vpack.c.b16 %v161, %v157
  %v254 = vpack.c.b16 %v162, %v158
  %v255 = vpack.c.b16 %v167, %v163
  %v256 = vpack.c.b16 %v168, %v164
  %v257 = vpack.c.b16 %v169, %v165
  %v258 = vpack.c.b16 %v170, %v166
  %v259 = vpack.c.b16 %v175, %v171
  %v260 = vpack.c.b16 %v176, %v172
  %v261 = vpack.c.b16 %v177, %v173
  %v262 = vpack.c.b16 %v178, %v174
  %v263 = vpack.c.b16 %v183, %v179
  %v264 = vpack.c.b16 %v184, %v180
  %v265 = vpack.c.b16 %v185, %v181
  %v266 = vpack.c.b16 %v186, %v182
  %v267 = vpack.c.b16 %v191, %v187
  %v268 = vpack.c.b16 %v192, %v188
  %v269 = vpack.c.b16 %v193, %v189
  %v270 = vpack.c.b16 %v194, %v190
  %v271 = vpack.c.b16 %v199, %v195
  %v272 = vpack.c.b16 %v200, %v196
  %v273 = vpack.c.b16 %v201, %v197
  %v274 = vpack.c.b16 %v202, %v198
  %v275 = vpack.c.b16 %v207, %v203
  %v276 = vpack.c.b16 %v208, %v204
  %v277 = vpack.c.b16 %v209, %v205
  %v278 = vpack.c.b16 %v210, %v206
  %v279 = vpack.c.b16 %v215, %v211
  %v280 = vpack.c.b16 %v216, %v212
  %v281 = vpack.c.b16 %v217, %v213
  %v282 = vpack.c.b16 %v218, %v214
  %v283 = vpack.c.b16 %v223, %v219
  %v284 = vpack.c.b16 %v224, %v220
  %v285 = vpack.c.b16 %v225, %v221
  %v286 = vpack.c.b16 %v226, %v222
  %v287 = vpack.c.b16 %v231, %v227
  %v288 = vpack.c.b16 %v232, %v228
  %v289 = vpack.c.b16 %v233, %v229
  %v290 = vpack.c.b16 %v234, %v230
  %v291 = vpack.c.b16 %v239, %v235
  %v292 = vpack.c.b16 %v240, %v236
  %v293 = vpack.c.b16 %v241, %v237
  %v294 = vpack.c.b16 %v242, %v238
  %v295 = vpack.c.b16 %v247, %v243
  %v296 = vpack.c.b16 %v248, %v244
  %v297 = vpack.c.b16 %v249, %v245
  %v298 = vpack.c.b16 %v250, %v246
  %vm347 = vcmask 523264
  %v349 = vsel %vm347, %v102, 0
  %v352 = vsel %vm347, %v104, 0
  %354 = vmatprep.subr.bf16.mxu0 %v252
  %355 = vmatpush1.bf16.msra.mxu0 %v251
  %356 = vmatprep.subr.bf16.mxu0 %v256
  %357 = vmatpush1.bf16.msra.mxu0 %v255
  %358 = vmatprep.subr.bf16.mxu0 %v260
  %359 = vmatpush1.bf16.msra.mxu0 %v259
  %360 = vmatprep.subr.bf16.mxu0 %v264
  %361 = vmatpush1.bf16.msra.mxu0 %v263
  %362 = vmatprep.subr.bf16.mxu0 %v268
  %363 = vmatpush1.bf16.msra.mxu0 %v267
  %364 = vmatprep.subr.bf16.mxu0 %v272
  %365 = vmatpush1.bf16.msra.mxu0 %v271
  %366 = vmatprep.subr.bf16.mxu0 %v276
  %367 = vmatpush1.bf16.msra.mxu0 %v275
  %368 = vmatprep.subr.bf16.mxu0 %v280
  %369 = vmatpush1.bf16.msra.mxu0 %v279
  %370 = vmatprep.subr.bf16.mxu0 %v284
  %371 = vmatpush1.bf16.msra.mxu0 %v283
  %372 = vmatprep.subr.bf16.mxu0 %v288
  %373 = vmatpush1.bf16.msra.mxu0 %v287
  %374 = vmatprep.subr.bf16.mxu0 %v292
  %375 = vmatpush1.bf16.msra.mxu0 %v291
  %376 = vmatprep.subr.bf16.mxu0 %v296
  %377 = vmatpush1.bf16.msra.mxu0 %v295
  %378 = vmatprep.subr.bf16.mxu0 0
  %379 = vmatpush1.bf16.msra.mxu0 0
  %380 = vmatprep.subr.bf16.mxu0 0
  %381 = vmatpush1.bf16.msra.mxu0 0
  %382 = vmatprep.subr.bf16.mxu0 0
  %383 = vmatpush1.bf16.msra.mxu0 0
  %384 = vmatprep.subr.bf16.mxu0 0
  %385 = vmatpush1.bf16.msra.mxu0 0
  %386 = vmatprep.mubr.bf16.mxu0 %v349
  %387 = vmatmul.mubr.bf16.gmra.mrb[0].mxu0 %v101
  %v388 = vpop.f32.mrb[0].mxu0
  %v389 = vadd.f32 %v72, %v388
  %v390 = vpop.f32.mrb[0].mxu0
  %v391 = vadd.f32 %v76, %v390
  %v392 = vpop.f32.mrb[0].mxu0
  %v393 = vadd.f32 %v72, %v392
  %v394 = vpop.f32.mrb[0].mxu0
  %v395 = vadd.f32 %v76, %v394
  %396 = vmatprep.mubr.bf16.mxu0 %v352
  %397 = vmatmul.mubr.bf16.gmra.mrb[0].mxu0 %v103
  %v398 = vpop.f32.mrb[0].mxu0
  %v399 = vadd.f32 %v72, %v398
  %v400 = vpop.f32.mrb[0].mxu0
  %v401 = vadd.f32 %v76, %v400
  %v402 = vpop.f32.mrb[0].mxu0
  %v403 = vadd.f32 %v72, %v402
  %v404 = vpop.f32.mrb[0].mxu0
  %v405 = vadd.f32 %v76, %v404
  %406 = vdwg.mxu0
  %407 = vmatprep.subr.bf16.mxu0 %v254
  %408 = vmatpush1.bf16.msra.mxu0 %v253
  %409 = vmatprep.subr.bf16.mxu0 %v258
  %410 = vmatpush1.bf16.msra.mxu0 %v257
  %411 = vmatprep.subr.bf16.mxu0 %v262
  %412 = vmatpush1.bf16.msra.mxu0 %v261
  %413 = vmatprep.subr.bf16.mxu0 %v266
  %414 = vmatpush1.bf16.msra.mxu0 %v265
  %415 = vmatprep.subr.bf16.mxu0 %v270
  %416 = vmatpush1.bf16.msra.mxu0 %v269
  %417 = vmatprep.subr.bf16.mxu0 %v274
  %418 = vmatpush1.bf16.msra.mxu0 %v273
  %419 = vmatprep.subr.bf16.mxu0 %v278
  %420 = vmatpush1.bf16.msra.mxu0 %v277
  %421 = vmatprep.subr.bf16.mxu0 %v282
  %422 = vmatpush1.bf16.msra.mxu0 %v281
  %423 = vmatprep.subr.bf16.mxu0 %v286
  %424 = vmatpush1.bf16.msra.mxu0 %v285
  %425 = vmatprep.subr.bf16.mxu0 %v290
  %426 = vmatpush1.bf16.msra.mxu0 %v289
  %427 = vmatprep.subr.bf16.mxu0 %v294
  %428 = vmatpush1.bf16.msra.mxu0 %v293
  %429 = vmatprep.subr.bf16.mxu0 %v298
  %430 = vmatpush1.bf16.msra.mxu0 %v297
  %431 = vmatprep.subr.bf16.mxu0 0
  %432 = vmatpush1.bf16.msra.mxu0 0
  %433 = vmatprep.subr.bf16.mxu0 0
  %434 = vmatpush1.bf16.msra.mxu0 0
  %435 = vmatprep.subr.bf16.mxu0 0
  %436 = vmatpush1.bf16.msra.mxu0 0
  %437 = vmatprep.subr.bf16.mxu0 0
  %438 = vmatpush1.bf16.msra.mxu0 0
  %439 = vmatprep.mubr.bf16.mxu0 %v349
  %440 = vmatmul.mubr.bf16.gmra.mrb[0].mxu0 %v101
  %v441 = vpop.f32.mrb[0].mxu0
  %v442 = vadd.f32 %v80, %v441
  %v443 = vpop.f32.mrb[0].mxu0
  %v444 = vadd.f32 %v84, %v443
  %v445 = vpop.f32.mrb[0].mxu0
  %v446 = vadd.f32 %v80, %v445
  %v447 = vpop.f32.mrb[0].mxu0
  %v448 = vadd.f32 %v84, %v447
  %449 = vmatprep.mubr.bf16.mxu0 %v352
  %450 = vmatmul.mubr.bf16.gmra.mrb[0].mxu0 %v103
  %v451 = vpop.f32.mrb[0].mxu0
  %v452 = vadd.f32 %v80, %v451
  %v453 = vpop.f32.mrb[0].mxu0
  %v454 = vadd.f32 %v84, %v453
  %v455 = vpop.f32.mrb[0].mxu0
  %v456 = vadd.f32 %v80, %v455
  %v457 = vpop.f32.mrb[0].mxu0
  %v458 = vadd.f32 %v84, %v457
  %459 = vdwg.mxu0
  %v460 = vpack.c.bf16 %v393, %v389
  %v461 = vpack.c.bf16 %v395, %v391
  %v462 = vpack.c.bf16 %v446, %v442
  %v463 = vpack.c.bf16 %v448, %v444
  %v464 = vpack.c.bf16 %v403, %v399
  %v465 = vpack.c.bf16 %v405, %v401
  %v466 = vpack.c.bf16 %v456, %v452
  %v467 = vpack.c.bf16 %v458, %v454
  %v476 = vunpack.c.l.b16 %v460
  %v477 = vunpack.c.l.b16 %v461
  %v478 = vunpack.c.l.b16 %v462
  %v479 = vunpack.c.l.b16 %v463
  %v480 = vunpack.c.h.b16 %v460
  %v481 = vunpack.c.h.b16 %v461
  %v482 = vunpack.c.h.b16 %v462
  %v483 = vunpack.c.h.b16 %v463
  %v484 = vunpack.c.l.b16 %v464
  %v485 = vunpack.c.l.b16 %v465
  %v486 = vunpack.c.l.b16 %v466
  %v487 = vunpack.c.l.b16 %v467
  %v488 = vunpack.c.h.b16 %v464
  %v489 = vunpack.c.h.b16 %v465
  %v490 = vunpack.c.h.b16 %v466
  %v491 = vunpack.c.h.b16 %v467
  %v492 = vpack.c.b16 %v477, %v476
  %v493 = vpack.c.b16 %v479, %v478
  %v494 = vpack.c.b16 %v481, %v480
  %v495 = vpack.c.b16 %v483, %v482
  %v496 = vpack.c.b16 %v485, %v484
  %v497 = vpack.c.b16 %v487, %v486
  %v498 = vpack.c.b16 %v489, %v488
  %v499 = vpack.c.b16 %v491, %v490
  %508 = vst [vmem:[%s3] sm:$0xff] %v492
  %509 = vst [vmem:[%s3 + $0x8] sm:$0xff] %v493
  %510 = vst [vmem:[%s3 + $0x10] sm:$0xff] %v494
  %511 = vst [vmem:[%s3 + $0x18] sm:$0xff] %v495
  %512 = vst [vmem:[%s3 + $0x20] sm:$0xff] %v496
  %513 = vst [vmem:[%s3 + $0x28] sm:$0xff] %v497
  %514 = vst [vmem:[%s3 + $0x30] sm:$0xff] %v498
  %515 = vst [vmem:[%s3 + $0x38] sm:$0xff] %v499
  // Predicated region
  $region14: #{patch_embed_forward.1} parent=0 // pred_check
    _
  $region15: #{patch_embed_forward.1} parent=0 // pred_check_branch
    %517 = sbr.rel (0) target = $region17
  $region16: #{patch_embed_forward.1} parent=0 // pred_region
    _
  $region17: #{patch_embed_forward.1} parent=0 // pred_fallthru
    _
  // Predicated region
  $region18: #{patch_embed_forward.1} parent=0 // pred_check
    _
  $region19: #{patch_embed_forward.1} parent=0 // pred_check_branch
    %519 = sbr.rel (0) target = $region21
  $region20: #{patch_embed_forward.1} parent=0 // pred_region
    _
  $region21: #{patch_embed_forward.1} parent=0 // pred_fallthru
    _

</llo_original>
